<compile_context>
chip_gen: v6e
topology: v6e:2x2x1
jax: 0.10.0
libtpu: 0.0.40
codegen_flags: <defaults>
</compile_context>

<pallas_src>
import math

import jax
import jax.numpy as jnp
from jax.experimental import pallas as pl
from jax.experimental.pallas import tpu as pltpu

BN_EPS = 1e-5
LANE = 128


# ---------------------------------------------------------------------------
# Kernel
# ---------------------------------------------------------------------------
def _hidden_xavier_bn_kernel(x_ref, w_ref, gamma_ref, beta_ref, o_ref, acc_ref):
    k = pl.program_id(1)

    @pl.when(k == 0)
    def _():
        acc_ref[...] = jnp.zeros_like(acc_ref)

    # MXU matmul; inputs may be bf16, accumulation is always f32.
    acc_ref[...] += jnp.dot(x_ref[...], w_ref[...],
                            preferred_element_type=jnp.float32)

    @pl.when(k == pl.num_programs(1) - 1)
    def _():
        y = acc_ref[...]                                  # (N, tn) f32, full batch
        inv_n = 1.0 / y.shape[0]

        # One-pass batch statistics (biased variance), all in f32.
        mean = jnp.sum(y, axis=0, keepdims=True) * inv_n
        ex2 = jnp.sum(y * y, axis=0, keepdims=True) * inv_n
        var = jnp.maximum(ex2 - mean * mean, 0.0)

        # gamma folded into the scale; rsqrt goes to the EUP (free slot).
        scale = gamma_ref[...] * jax.lax.rsqrt(var + BN_EPS)   # (1, tn)
        shift = beta_ref[...] - mean * scale                   # (1, tn)
        out = y * scale + shift

        # Activation (hps['activation']) assumed to be ReLU.
        # TODO(synk): plumb through other activations if hps['activation'] != ReLU.
        o_ref[...] = jnp.maximum(out, 0.0).astype(o_ref.dtype)


# ---------------------------------------------------------------------------
# Parameter preparation (hoisted out of the per-call path)
# ---------------------------------------------------------------------------
def prepare_hidden_xavier_bn_params(weight, bias, gamma, beta, *,
                                    compute_dtype=jnp.bfloat16):
    """Pre-transpose, lane-pad and cast the layer parameters once.

    weight: (size_out, size_in)  (PyTorch nn.Linear convention)
    bias:   (size_out,)          unused: exactly cancelled by the BN mean
                                 subtraction in training mode.
    gamma, beta: (size_out,)     BatchNorm1d affine parameters.
    """
    del bias  # mathematically cancelled by BN mean subtraction (training mode)

    size_out, size_in = weight.shape
    size_out_p = max(LANE, ((size_out + LANE - 1) // LANE) * LANE)
    pad = size_out_p - size_out

    w_t = weight.T                                        # (size_in, size_out)
    if pad:
        # Zero weight columns + gamma_pad=0 + beta_pad=0 keep padded outputs 0.
        w_t = jnp.pad(w_t, ((0, 0), (0, pad)))
        gamma = jnp.pad(gamma, (0, pad))
        beta = jnp.pad(beta, (0, pad))

    return {
        "w_t": w_t.astype(compute_dtype),                 # (size_in, size_out_p)
        "gamma": gamma.reshape(1, size_out_p).astype(jnp.float32),
        "beta": beta.reshape(1, size_out_p).astype(jnp.float32),
        "size_in": size_in,
        "size_out": size_out,
        "compute_dtype": compute_dtype,
    }


# ---------------------------------------------------------------------------
# Tile selection
# ---------------------------------------------------------------------------
def _pick_tn(size_out_p, block_n_out):
    cands = sorted({c for c in (block_n_out, 512, 256, 128)
                    if c >= LANE and c % LANE == 0 and size_out_p % c == 0},
                   reverse=True)
    # Prefer the largest tile that still leaves >= 2 feature tiles, so the
    # "parallel" axis can shard across v7x's two TensorCores.
    for c in cands:
        if size_out_p // c >= 2:
            return c
    return cands[-1]


def _pick_tk(size_in, block_k):
    if size_in % LANE != 0:
        # TODO(synk): pad size_in on the host to enable K-tiling for
        # non-128-multiple reduction dims; for now consume it in one block.
        return size_in
    for c in (block_k, 1024, 512, 256, 128):
        if c >= LANE and c % LANE == 0 and size_in % c == 0:
            return c
    return size_in


# ---------------------------------------------------------------------------
# Forward
# ---------------------------------------------------------------------------
def hidden_xavier_bn_apply(x, params, *, block_n_out=512, block_k=512,
                           out_dtype=jnp.float32):
    """Run the forward pass with pre-prepared parameters."""
    n, size_in = x.shape
    if n < 2:
        # PyTorch BatchNorm1d raises for batch size 1 in training mode.
        raise ValueError("BatchNorm1d (training) requires batch size >= 2")
    assert size_in == params["size_in"]

    w_t = params["w_t"]
    size_out_p = w_t.shape[1]
    compute_dtype = params["compute_dtype"]
    x_c = x.astype(compute_dtype)

    tn = _pick_tn(size_out_p, block_n_out)
    tk = _pick_tk(size_in, block_k)
    grid = (size_out_p // tn, size_in // tk)   # (feature tiles, reduction tiles)

    # Explicit scoped-VMEM budget from the actual tile footprint (double
    # buffers on the streamed operands + f32 accumulator), capped for v7x.
    cbytes = jnp.dtype(compute_dtype).itemsize
    obytes = jnp.dtype(out_dtype).itemsize
    footprint = (2 * n * tk * cbytes          # x tiles
                 + 2 * tk * tn * cbytes       # weight tiles
                 + 2 * n * tn * obytes        # output tiles
                 + n * tn * 4                 # f32 accumulator
                 + 4 * tn * 4)                # gamma / beta rows
    vmem_limit = int(min(max(int(footprint * 1.5) + (2 << 20), 16 << 20),
                         64 << 20))

    out = pl.pallas_call(
        _hidden_xavier_bn_kernel,
        out_shape=jax.ShapeDtypeStruct((n, size_out_p), out_dtype),
        grid=grid,
        in_specs=[
            pl.BlockSpec((n, tk), lambda j, k: (0, k)),     # x (streamed along K)
            pl.BlockSpec((tk, tn), lambda j, k: (k, j)),    # weight tile
            pl.BlockSpec((1, tn), lambda j, k: (0, j)),     # gamma tile
            pl.BlockSpec((1, tn), lambda j, k: (0, j)),     # beta tile
        ],
        out_specs=pl.BlockSpec((n, tn), lambda j, k: (0, j)),
        scratch_shapes=[pltpu.VMEM((n, tn), jnp.float32)],  # f32 accumulator
        compiler_params=pltpu.CompilerParams(
            dimension_semantics=("parallel", "arbitrary"),
            vmem_limit_bytes=vmem_limit),
    )(x_c, w_t, params["gamma"], params["beta"])

    # Strip the lane padding.
    return out[:, :params["size_out"]]


def hidden_xavier_bn_forward(x, weight, bias, gamma, beta, *,
                             compute_dtype=jnp.bfloat16,
                             block_n_out=512, block_k=512,
                             out_dtype=jnp.float32):
    """Convenience wrapper (prepares params per call).  In steady state call
    prepare_hidden_xavier_bn_params() once and reuse hidden_xavier_bn_apply()."""
    params = prepare_hidden_xavier_bn_params(weight, bias, gamma, beta,
                                             compute_dtype=compute_dtype)
    return hidden_xavier_bn_apply(x, params, block_n_out=block_n_out,
                                  block_k=block_k, out_dtype=out_dtype)


# ---------------------------------------------------------------------------
# Init + reference + demo
# ---------------------------------------------------------------------------
def _init_params(key, size_in, size_out):
    k_w, k_b = jax.random.split(key)
    bound_w = math.sqrt(6.0 / (size_in + size_out))       # xavier_uniform_
    weight = jax.random.uniform(
        k_w, (size_out, size_in), jnp.float32, minval=-bound_w, maxval=bound_w)
    bound_b = 1.0 / math.sqrt(size_in)                    # nn.Linear default bias
    bias = jax.random.uniform(
        k_b, (size_out,), jnp.float32, minval=-bound_b, maxval=bound_b)
    gamma = jnp.ones((size_out,), jnp.float32)
    beta = jnp.zeros((size_out,), jnp.float32)
    return weight, bias, gamma, beta


def _reference(x, weight, bias, gamma, beta):
    # Full PyTorch math, *including* the linear bias (must cancel in BN).
    y = x @ weight.T + bias
    mu = y.mean(axis=0, keepdims=True)
    var = ((y - mu) ** 2).mean(axis=0, keepdims=True)
    return jnp.maximum(gamma * (y - mu) / jnp.sqrt(var + BN_EPS) + beta, 0.0)


if __name__ == "__main__":
    key = jax.random.PRNGKey(0)
    k1, k2, k3, k4 = jax.random.split(key, 4)

    # --- Case 1: small shapes, f32 compute path, tight check ----------------
    n1, in1, out1 = 8, 32, 32
    x1 = jax.random.normal(k1, (n1, in1), jnp.float32)
    w1, b1, g1, be1 = _init_params(k2, in1, out1)
    p1 = prepare_hidden_xavier_bn_params(w1, b1, g1, be1,
                                         compute_dtype=jnp.float32)
    y1 = jax.block_until_ready(hidden_xavier_bn_apply(x1, p1))
    r1 = _reference(x1, w1, b1, g1, be1)
    assert y1.shape == r1.shape
    assert jnp.allclose(y1, r1, atol=1e-4, rtol=1e-4)

    # --- Case 2: bf16 compute path, K-tiling + multi feature tiles + padding -
    n2, in2, out2 = 16, 384, 200       # tk=128 (K grid=3), size_out padded to 256
    x2 = jax.random.normal(k3, (n2, in2), jnp.float32)
    w2, b2, g2, be2 = _init_params(k4, in2, out2)
    p2 = prepare_hidden_xavier_bn_params(w2, b2, g2, be2,
                                         compute_dtype=jnp.bfloat16)
    y2 = jax.block_until_ready(hidden_xavier_bn_apply(x2, p2))
    r2 = _reference(x2, w2, b2, g2, be2)
    assert y2.shape == r2.shape
    assert jnp.allclose(y2, r2, atol=7e-2, rtol=5e-2)      # bf16 matmul tolerance

    # TODO(synk): BatchNorm1d running_mean / running_var updates (training-mode
    # side effects) are not reproduced; only the forward output is.

    print("KERNEL_OK")
</pallas_src>

<mosaic_0001>
module attributes {stable_mosaic.version = 11 : i64} {
  func.func @_hidden_xavier_bn_kernel(%arg0: i32, %arg1: i32, %arg2: memref<8x32xf32, #tpu.memory_space<vmem>>, %arg3: memref<32x128xf32, #tpu.memory_space<vmem>>, %arg4: memref<1x128xf32, #tpu.memory_space<vmem>>, %arg5: memref<1x128xf32, #tpu.memory_space<vmem>>, %arg6: memref<8x128xf32, #tpu.memory_space<vmem>>, %arg7: memref<8x128xf32, #tpu.memory_space<vmem>>) attributes {dimension_semantics = [#tpu.dimension_semantics<parallel>, #tpu.dimension_semantics<arbitrary>], iteration_bounds = array<i64: 1, 1>, scalar_prefetch = 0 : i64, scratch_operands = 1 : i64, tpu.core_type = #tpu.core_type<tc>, window_params = [{transform_indices = @transform_0, window_bounds = array<i64: 8, 32>}, {transform_indices = @transform_1, window_bounds = array<i64: 32, 128>}, {transform_indices = @transform_2, window_bounds = array<i64: 1, 128>}, {transform_indices = @transform_3, window_bounds = array<i64: 1, 128>}, {transform_indices = @transform_4, window_bounds = array<i64: 8, 128>}]} {
    %c0_i32 = arith.constant 0 : i32
    %0 = arith.cmpi eq, %arg1, %c0_i32 : i32
    %1 = arith.extui %0 : i1 to i32
    %c0_i32_0 = arith.constant 0 : i32
    %2 = arith.cmpi ne, %1, %c0_i32_0 : i32
    scf.if %2 {
      %cst_10 = arith.constant 0.000000e+00 : f32
      %12 = vector.broadcast %cst_10 : f32 to vector<8x128xf32>
      %c0_11 = arith.constant 0 : index
      %c0_12 = arith.constant 0 : index
      %13 = vector.load %arg7[%c0_11, %c0_12] : memref<8x128xf32, #tpu.memory_space<vmem>>, vector<8x128xf32>
      tpu.vector_store %arg7[%c0_11, %c0_12], %12 {strides = array<i32>} : memref<8x128xf32, #tpu.memory_space<vmem>>, vector<8x128xf32>,
    } else {
    }
    %c0 = arith.constant 0 : index
    %c0_1 = arith.constant 0 : index
    %3 = vector.load %arg7[%c0, %c0_1] : memref<8x128xf32, #tpu.memory_space<vmem>>, vector<8x128xf32>
    %c0_2 = arith.constant 0 : index
    %c0_3 = arith.constant 0 : index
    %4 = vector.load %arg2[%c0_2, %c0_3] : memref<8x32xf32, #tpu.memory_space<vmem>>, vector<8x32xf32>
    %c0_4 = arith.constant 0 : index
    %c0_5 = arith.constant 0 : index
    %5 = vector.load %arg3[%c0_4, %c0_5] : memref<32x128xf32, #tpu.memory_space<vmem>>, vector<32x128xf32>
    %cst = arith.constant dense<0.000000e+00> : vector<8x128xf32>
    %6 = tpu.matmul %4, %5, %cst {dimension_numbers = #tpu.dot_dimension_numbers<[1], [0], [0], [1], [0, 0, 1, 1], [], []>} : vector<8x32xf32>, vector<32x128xf32>, vector<8x128xf32> -> vector<8x128xf32>
    %7 = arith.addf %3, %6 : vector<8x128xf32>
    %c0_6 = arith.constant 0 : index
    %c0_7 = arith.constant 0 : index
    %8 = vector.load %arg7[%c0_6, %c0_7] : memref<8x128xf32, #tpu.memory_space<vmem>>, vector<8x128xf32>
    tpu.vector_store %arg7[%c0_6, %c0_7], %7 {strides = array<i32>} : memref<8x128xf32, #tpu.memory_space<vmem>>, vector<8x128xf32>,
    %c0_i32_8 = arith.constant 0 : i32
    %9 = arith.cmpi eq, %arg1, %c0_i32_8 : i32
    %10 = arith.extui %9 : i1 to i32
    %c0_i32_9 = arith.constant 0 : i32
    %11 = arith.cmpi ne, %10, %c0_i32_9 : i32
    scf.if %11 {
      %c0_10 = arith.constant 0 : index
      %c0_11 = arith.constant 0 : index
      %12 = vector.load %arg7[%c0_10, %c0_11] : memref<8x128xf32, #tpu.memory_space<vmem>>, vector<8x128xf32>
      %cst_12 = arith.constant dense<0.000000e+00> : vector<128xf32>
      %13 = vector.multi_reduction <add>, %12, %cst_12 [0] : vector<8x128xf32> to vector<128xf32>
      %14 = vector.shape_cast %13 : vector<128xf32> to vector<1x128xf32>
      %cst_13 = arith.constant 1.250000e-01 : f32
      %15 = vector.broadcast %cst_13 : f32 to vector<1x128xf32>
      %16 = arith.mulf %14, %15 : vector<1x128xf32>
      %17 = arith.mulf %12, %12 : vector<8x128xf32>
      %cst_14 = arith.constant dense<0.000000e+00> : vector<128xf32>
      %18 = vector.multi_reduction <add>, %17, %cst_14 [0] : vector<8x128xf32> to vector<128xf32>
      %19 = vector.shape_cast %18 : vector<128xf32> to vector<1x128xf32>
      %cst_15 = arith.constant 1.250000e-01 : f32
      %20 = vector.broadcast %cst_15 : f32 to vector<1x128xf32>
      %21 = arith.mulf %19, %20 : vector<1x128xf32>
      %22 = arith.mulf %16, %16 : vector<1x128xf32>
      %23 = arith.subf %21, %22 : vector<1x128xf32>
      %cst_16 = arith.constant 0.000000e+00 : f32
      %24 = vector.broadcast %cst_16 : f32 to vector<1x128xf32>
      %25 = arith.maximumf %23, %24 : vector<1x128xf32>
      %c0_17 = arith.constant 0 : index
      %c0_18 = arith.constant 0 : index
      %26 = vector.load %arg4[%c0_17, %c0_18] : memref<1x128xf32, #tpu.memory_space<vmem>>, vector<1x128xf32>
      %cst_19 = arith.constant 9.99999974E-6 : f32
      %27 = vector.broadcast %cst_19 : f32 to vector<1x128xf32>
      %28 = arith.addf %25, %27 : vector<1x128xf32>
      %29 = math.rsqrt %28 : vector<1x128xf32>
      %30 = arith.mulf %26, %29 : vector<1x128xf32>
      %c0_20 = arith.constant 0 : index
      %c0_21 = arith.constant 0 : index
      %31 = vector.load %arg5[%c0_20, %c0_21] : memref<1x128xf32, #tpu.memory_space<vmem>>, vector<1x128xf32>
      %32 = arith.mulf %16, %30 : vector<1x128xf32>
      %33 = arith.subf %31, %32 : vector<1x128xf32>
      %34 = vector.broadcast %30 : vector<1x128xf32> to vector<8x128xf32>
      %35 = arith.mulf %12, %34 : vector<8x128xf32>
      %36 = vector.broadcast %33 : vector<1x128xf32> to vector<8x128xf32>
      %37 = arith.addf %35, %36 : vector<8x128xf32>
      %cst_22 = arith.constant 0.000000e+00 : f32
      %38 = vector.broadcast %cst_22 : f32 to vector<8x128xf32>
      %39 = arith.maximumf %37, %38 : vector<8x128xf32>
      %c0_23 = arith.constant 0 : index
      %c0_24 = arith.constant 0 : index
      %40 = vector.load %arg6[%c0_23, %c0_24] : memref<8x128xf32, #tpu.memory_space<vmem>>, vector<8x128xf32>
      tpu.vector_store %arg6[%c0_23, %c0_24], %39 {strides = array<i32>} : memref<8x128xf32, #tpu.memory_space<vmem>>, vector<8x128xf32>,
    } else {
    }
    return
  }
  func.func @transform_0(%arg0: i32, %arg1: i32) -> (i32, i32) {
    %c0_i32 = arith.constant 0 : i32
    %c0_i32_0 = arith.constant 0 : i32
    return %c0_i32, %arg1 : i32, i32
  }
  func.func @transform_1(%arg0: i32, %arg1: i32) -> (i32, i32) {
    %c0_i32 = arith.constant 0 : i32
    return %arg1, %arg0 : i32, i32
  }
  func.func @transform_2(%arg0: i32, %arg1: i32) -> (i32, i32) {
    %c0_i32 = arith.constant 0 : i32
    %c0_i32_0 = arith.constant 0 : i32
    return %c0_i32, %arg0 : i32, i32
  }
  func.func @transform_3(%arg0: i32, %arg1: i32) -> (i32, i32) {
    %c0_i32 = arith.constant 0 : i32
    %c0_i32_0 = arith.constant 0 : i32
    return %c0_i32, %arg0 : i32, i32
  }
  func.func @transform_4(%arg0: i32, %arg1: i32) -> (i32, i32) {
    %c0_i32 = arith.constant 0 : i32
    %c0_i32_0 = arith.constant 0 : i32
    return %c0_i32, %arg0 : i32, i32
  }
}

</mosaic_0001>

<llo_original>
// kernel: tpu_custom_call.1
$region0: #{tpu_custom_call.1}
  #allocation0 [shape = 'u32[]', space=smem, size = 0x4, offset = 0x4, fixed_abs, tag = 'smem constant byte address 0x4 - core index']
  #allocation1 [shape = 'u32[144,128]{1,0:T(1,128)}', space=vmem, size = 0x12000, scoped, tag = 'internal scratch']
  #allocation2 [shape = 'f32[8,128]{1,0:T(8,128)}', space=vmem, size = 0x1000, scoped, tag = 'scratch operand']
  %s0 = inlined_call_operand.hbm [shape: f32[8,32], index: 0, kind: input, shape index: {}]
  %s1 = inlined_call_operand.hbm [shape: f32[32,128], index: 1, kind: input, shape index: {}]
  %s2 = inlined_call_operand.vmem [shape: f32[1,128], index: 2, kind: input, shape index: {}]
  %s3 = inlined_call_operand.vmem [shape: f32[1,128], index: 3, kind: input, shape index: {}]
  %s4 = inlined_call_operand.hbm [shape: f32[8,128], index: 4, kind: output, shape index: {}]
  %s5 = sld [smem:[#allocation0]]
  $region42: #{tpu_custom_call.1} parent=0
    _
  %s7 = ssub.s32 1, %s5
  %s8 = scalar_select 0, %s7, %s5
  $region1: #{tpu_custom_call.1} parent=0
    #allocation3 [shape = 'u8[4096]{0}', space=vmem, size = 0x1000, scoped, tag = 'input window, operand 0, single buffered']
    #allocation4 [shape = 's32[1]{0}', space=sflag, size = 0x4, scoped, tag = 'scoped memory for tpu_custom_call.1']
    #allocation5 [shape = 's32[1]{0}', space=sflag, size = 0x4, scoped, tag = 'scoped memory for tpu_custom_call.1']
    #allocation6 [shape = 'u8[16384]{0}', space=vmem, size = 0x4000, scoped, tag = 'input window, operand 1, single buffered']
    #allocation7 [shape = 's32[1]{0}', space=sflag, size = 0x4, scoped, tag = 'scoped memory for tpu_custom_call.1']
    #allocation8 [shape = 'u8[4096]{0}', space=vmem, size = 0x1000, scoped, tag = 'output window, operand 0, single buffered']
    %9 = vsyncpa [#allocation4], 0
    %10 = vsyncpa [#allocation7], 0
    %11 = vsyncpa [#allocation5], 0
    // Predicated region
    $region2: #{tpu_custom_call.1} parent=1 // pred_check
      _
    $region3: #{tpu_custom_call.1} parent=1 // pred_check_branch
      %13 = sbr.rel (0) target = $region5
    $region4: #{tpu_custom_call.1} parent=1 // pred_region
      %s15 = ssub.s32 128, 128
      %16 = vsyncadd [#allocation4], %s15
      %s18 = sshll.u32 [#allocation3], 4
      %s19 = int_to_ptr.vmem [resolvable:$true] %s18
      %21 = dma.hbm_to_vmem [thread:$0]  %s0, 128, %s19, [#allocation4]
    $region5: #{tpu_custom_call.1} parent=1 // pred_fallthru
      _
    // Predicated region
    $region6: #{tpu_custom_call.1} parent=1 // pred_check
      _
    $region7: #{tpu_custom_call.1} parent=1 // pred_check_branch
      %23 = sbr.rel (0) target = $region9
    $region8: #{tpu_custom_call.1} parent=1 // pred_region
      %s25 = ssub.s32 512, 512
      %26 = vsyncadd [#allocation7], %s25
      %s27 = sshll.u32 [#allocation6], 4
      %s28 = int_to_ptr.vmem [resolvable:$true] %s27
      %33 = dma.hbm_to_vmem [thread:$0]  %s1, 512, %s28, [#allocation7], 128, 128, 8
    $region9: #{tpu_custom_call.1} parent=1 // pred_fallthru
      _
    // Predicated region
    $region10: #{tpu_custom_call.1} parent=1 // pred_check
      _
    $region11: #{tpu_custom_call.1} parent=1 // pred_check_branch
      %35 = sbr.rel (0) target = $region13
    $region12: #{tpu_custom_call.1} parent=1 // pred_region
      _
    $region13: #{tpu_custom_call.1} parent=1 // pred_fallthru
      _
    // Predicated region
    $region14: #{tpu_custom_call.1} parent=1 // pred_check
      _
    $region15: #{tpu_custom_call.1} parent=1 // pred_check_branch
      %37 = sbr.rel (0) target = $region17
    $region16: #{tpu_custom_call.1} parent=1 // pred_region
      _
    $region17: #{tpu_custom_call.1} parent=1 // pred_fallthru
      _
    // Predicated region
    $region18: #{tpu_custom_call.1} parent=1 // pred_check
      _
    $region19: #{tpu_custom_call.1} parent=1 // pred_check_branch
      %39 = sbr.rel (0) target = $region21
    $region20: #{tpu_custom_call.1} parent=1 // pred_region
      %40 = dma.done [#allocation4], 128
    $region21: #{tpu_custom_call.1} parent=1 // pred_fallthru
      _
    // Predicated region
    $region22: #{tpu_custom_call.1} parent=1 // pred_check
      _
    $region23: #{tpu_custom_call.1} parent=1 // pred_check_branch
      %42 = sbr.rel (0) target = $region25
    $region24: #{tpu_custom_call.1} parent=1 // pred_region
      %43 = dma.done [#allocation7], 512
    $region25: #{tpu_custom_call.1} parent=1 // pred_fallthru
      _
    %p44 = scmp.eq.s32.totalorder 0, 0
    // Predicated region
    $region26: #{tpu_custom_call.1} parent=1 // pred_check
      %p45 = pneg %p44
    $region27: #{tpu_custom_call.1} parent=1 // pred_check_branch
      %47 = sbr.rel (%p45) target = $region29
    $region28: #{tpu_custom_call.1} parent=1 // pred_region
      %48 = vst [vmem:[#allocation2] sm:$0xff] 0.0
    $region29: #{tpu_custom_call.1} parent=1 // pred_fallthru
      _
    %v49 = vld [vmem:[#allocation2] sm:$0xff]
    %v50 = vld [vmem:[#allocation3] sm:$0xff]
    %v51 = vld [vmem:[#allocation6] sm:$0xff]
    %v52 = vld [vmem:[#allocation6 + $0x8] sm:$0xff]
    %v53 = vld [vmem:[#allocation6 + $0x10] sm:$0xff]
    %v54 = vld [vmem:[#allocation6 + $0x18] sm:$0xff]
    %vm55 = vcmask 261120
    %v57 = vsel %vm55, %v50, 0
    %59 = vmatprep.subr.mxu0 0.0
    %60 = vmatpush1.msra.mxu0 0.0
    %61 = vmatprep.subr.mxu0 0.0
    %62 = vmatpush1.msra.mxu0 0.0
    %63 = vmatprep.subr.mxu0 0.0
    %64 = vmatpush1.msra.mxu0 0.0
    %65 = vmatprep.subr.mxu0 0.0
    %66 = vmatpush1.msra.mxu0 0.0
    %67 = vmatprep.subr.mxu0 0.0
    %68 = vmatpush1.msra.mxu0 0.0
    %69 = vmatprep.subr.mxu0 0.0
    %70 = vmatpush1.msra.mxu0 0.0
    %71 = vmatprep.subr.mxu0 0.0
    %72 = vmatpush1.msra.mxu0 0.0
    %73 = vmatprep.subr.mxu0 0.0
    %74 = vmatpush1.msra.mxu0 0.0
    %75 = vmatprep.subr.mxu0 0.0
    %76 = vmatpush1.msra.mxu0 0.0
    %77 = vmatprep.subr.mxu0 0.0
    %78 = vmatpush1.msra.mxu0 0.0
    %79 = vmatprep.subr.mxu0 0.0
    %80 = vmatpush1.msra.mxu0 0.0
    %81 = vmatprep.subr.mxu0 0.0
    %82 = vmatpush1.msra.mxu0 0.0
    %83 = vmatprep.subr.mxu0 0.0
    %84 = vmatpush1.msra.mxu0 %v54
    %85 = vmatprep.subr.mxu0 0.0
    %86 = vmatpush1.msra.mxu0 %v53
    %87 = vmatprep.subr.mxu0 0.0
    %88 = vmatpush1.msra.mxu0 %v52
    %89 = vmatprep.subr.mxu0 0.0
    %90 = vmatpush1.msra.mxu0 %v51
    %91 = vmatprep.subr.mxu0 0.0
    %92 = vmatpush2.msra.mxu0 0.0
    %93 = vmatprep.subr.mxu0 0.0
    %94 = vmatpush2.msra.mxu0 0.0
    %95 = vmatprep.subr.mxu0 0.0
    %96 = vmatpush2.msra.mxu0 0.0
    %97 = vmatprep.subr.mxu0 0.0
    %98 = vmatpush2.msra.mxu0 0.0
    %99 = vmatprep.subr.mxu0 0.0
    %100 = vmatpush2.msra.mxu0 0.0
    %101 = vmatprep.subr.mxu0 0.0
    %102 = vmatpush2.msra.mxu0 0.0
    %103 = vmatprep.subr.mxu0 0.0
    %104 = vmatpush2.msra.mxu0 0.0
    %105 = vmatprep.subr.mxu0 0.0
    %106 = vmatpush2.msra.mxu0 0.0
    %107 = vmatprep.subr.mxu0 0.0
    %108 = vmatpush2.msra.mxu0 0.0
    %109 = vmatprep.subr.mxu0 0.0
    %110 = vmatpush2.msra.mxu0 0.0
    %111 = vmatprep.subr.mxu0 0.0
    %112 = vmatpush2.msra.mxu0 0.0
    %113 = vmatprep.subr.mxu0 0.0
    %114 = vmatpush2.msra.mxu0 0.0
    %115 = vmatprep.subr.mxu0 0.0
    %116 = vmatpush2.msra.mxu0 0.0
    %117 = vmatprep.subr.mxu0 0.0
    %118 = vmatpush2.msra.mxu0 0.0
    %119 = vmatprep.subr.mxu0 0.0
    %120 = vmatpush2.msra.mxu0 0.0
    %121 = vmatprep.subr.mxu0 0.0
    %122 = vmatpush2.msra.mxu0 0.0
    %123 = vmatprep.mubr.f32.mxu0 0.0
    %124 = vmatmul.mubr.f32.gmra.mxu0 %v57
    %v125 = vpop.f32.mrf.mxu0
    %v126 = vadd.f32 0.0, %v125
    %v127 = vpop.f32.mrf.mxu0
    %128 = vdwg.mxu0
    %v129 = vadd.f32 %v49, %v126
    %130 = vst [vmem:[#allocation2] sm:$0xff] %v129
    // Predicated region
    $region30: #{tpu_custom_call.1} parent=1 // pred_check
      %p131 = pneg %p44
    $region31: #{tpu_custom_call.1} parent=1 // pred_check_branch
      %133 = sbr.rel (%p131) target = $region33
    $region32: #{tpu_custom_call.1} parent=1 // pred_region
      %v134 = vld [vmem:[#allocation2] sm:$0xff]
      %v135 = vrot.slane %v134, 4
      %v136 = vadd.f32 %v134, %v135
      %v137 = vrot.slane %v136, 2
      %v138 = vadd.f32 %v136, %v137
      %v139 = vrot.slane %v138, 1
      %v140 = vadd.f32 %v138, %v139
      %v141 = vmul.f32 %v140, 0.125
      %v142 = vmul.f32 %v134, %v134
      %v143 = vrot.slane %v142, 4
      %v144 = vadd.f32 %v142, %v143
      %v145 = vrot.slane %v144, 2
      %v146 = vadd.f32 %v144, %v145
      %v147 = vrot.slane %v146, 1
      %v148 = vadd.f32 %v146, %v147
      %v149 = vmul.f32 %v148, 0.125
      %v150 = vmul.f32 %v141, %v141
      %v151 = vsub.f32 %v149, %v150
      %v152 = vmax.f32 %v151, 0.0
      %v153 = vld [vmem:[%s2] sm:$0x1]
      %v154 = vadd.f32 %v152, 1e-05
      %v155 = vrsqrt.pop %v154
      %v156 = vmul.f32 %v153, %v155
      %v157 = vld [vmem:[%s3] sm:$0x1]
      %v158 = vmul.f32 %v141, %v156
      %v159 = vsub.f32 %v157, %v158
      %v161 = vlaneseq
      %v162 = vshrl.u32 %v161, 7
      %v163 = vsub.s32 0, %v162
      %v164 = vrot.slane %v156, %v163
      %v166 = vmul.f32 %v134, %v164
      %v168 = vlaneseq
      %v169 = vshrl.u32 %v168, 7
      %v170 = vsub.s32 0, %v169
      %v171 = vrot.slane %v159, %v170
      %v173 = vadd.f32 %v166, %v171
      %v174 = vmax.f32 %v173, 0.0
      %175 = vst [vmem:[#allocation8] sm:$0xff] %v174
    $region33: #{tpu_custom_call.1} parent=1 // pred_fallthru
      _
    // Predicated region
    $region34: #{tpu_custom_call.1} parent=1 // pred_check
      _
    $region35: #{tpu_custom_call.1} parent=1 // pred_check_branch
      %177 = sbr.rel (0) target = $region37
    $region36: #{tpu_custom_call.1} parent=1 // pred_region
      %s179 = ssub.s32 128, 128
      %180 = vsyncadd [#allocation5], %s179
      %s182 = sshll.u32 [#allocation8], 4
      %s183 = int_to_ptr.vmem [resolvable:$true] %s182
      %185 = dma.vmem_to_hbm [thread:$0]  %s183, 128, %s4, [#allocation5]
    $region37: #{tpu_custom_call.1} parent=1 // pred_fallthru
      _
    // Predicated region
    $region38: #{tpu_custom_call.1} parent=1 // pred_check
      _
    $region39: #{tpu_custom_call.1} parent=1 // pred_check_branch
      %187 = sbr.rel (0) target = $region41
    $region40: #{tpu_custom_call.1} parent=1 // pred_region
      %188 = dma.done [#allocation5], 128
    $region41: #{tpu_custom_call.1} parent=1 // pred_fallthru
      _
    %189 = vsyncpa [#allocation4], 1
    %190 = vsyncpa [#allocation7], 1
    %191 = vsyncpa [#allocation5], 1

</llo_original>
